<compile_context>
chip_gen: v6e
topology: v6e:2x2x1
jax: 0.10.0
libtpu: 0.0.40
codegen_flags: <defaults>
</compile_context>

<pallas_src>
import functools

import jax
import jax.numpy as jnp
from jax.experimental import pallas as pl
from jax.experimental.pallas import tpu as pltpu


def _round_up(x, m):
    return ((x + m - 1) // m) * m


def _corr_sim_kernel(xi_ref, xj_ref, o_ref, *, d_true, scale):
    """One (tm, tn) output tile of sigmoid(scale * corr(x, x)).

    xi_ref: (tm, d_pad) row block i, xj_ref: (tn, d_pad) row block j.
    Padded columns (>= d_true) are zero in the input and masked back to zero
    after centering, so the dot products / norms are exact.
    """
    f32 = jnp.float32

    def center_and_invnorm(ref):
        x = ref[...]
        xf = x.astype(f32)
        # Padded columns are zero, so the sum is exact; divide by the true D.
        mean = jnp.sum(xf, axis=1, keepdims=True) * (1.0 / d_true)
        col = jax.lax.broadcasted_iota(jnp.int32, xf.shape, 1)
        xc = jnp.where(col < d_true, xf - mean, 0.0)
        # 1/||xc|| via EUP rsqrt (separate VLIW slot) instead of a VPU divide.
        inv = jax.lax.rsqrt(jnp.sum(xc * xc, axis=1, keepdims=True))
        if x.dtype == jnp.bfloat16:
            # Keep the MXU operand in bf16 on v6e/v7x (full-rate matmul,
            # half the vreg/VMEM footprint); accumulation stays f32.
            xc = xc.astype(jnp.bfloat16)
        return xc, inv

    xci, inv_i = center_and_invnorm(xi_ref)   # (tm, d_pad), (tm, 1)
    xcj, inv_j = center_and_invnorm(xj_ref)   # (tn, d_pad), (tn, 1)

    # Numerator on the MXU: contract the last axes directly (no .T relayout).
    num = jax.lax.dot_general(
        xci, xcj,
        dimension_numbers=(((1,), (1,)), ((), ())),
        preferred_element_type=jnp.float32)                  # (tm, tn)

    # corr * scale via reciprocal-multiply; scale folded into the row factor.
    scaled = num * (inv_i * scale) * jnp.reshape(inv_j, (1, -1))
    o_ref[...] = jax.nn.sigmoid(scaled)


def gdecoder_sim(cell_emb, drug_emb, *, scale=15.0):
    """sigmoid(scale * corr(x, x)) for both embeddings in a single pallas_call.

    Both matrices are zero-padded into one (2, N_pad, D_pad) slab so that
    - the output last dim is lane-dense (multiple of 128 -> unmasked stores),
    - D_pad fills the MXU contraction (zero columns are no-ops after the
      in-kernel column mask),
    - both similarities share one kernel launch.
    Padded rows produce garbage (0/0) that is sliced away before returning,
    matching the reference exactly on the valid region.
    """
    n_c, d_c = cell_emb.shape
    n_d, d_d = drug_emb.shape
    assert d_c == d_d, "cell/drug embeddings must share the hidden dim"
    d = d_c

    n_max = max(n_c, n_d)
    # Tile <= 256: ~(256 x D_pad) f32 per input block x2 buffers + (256, 256)
    # output tiles stays far under the 32 MiB scoped-VMEM default on every
    # generation, including v7x (64 MiB physical).
    tile = 128 if n_max <= 128 else 256
    n_pad = _round_up(n_max, tile)
    d_pad = _round_up(d, 128)

    dtype = jnp.result_type(cell_emb.dtype, drug_emb.dtype)
    xb = jnp.zeros((2, n_pad, d_pad), dtype)
    xb = xb.at[0, :n_c, :d].set(cell_emb.astype(dtype))
    xb = xb.at[1, :n_d, :d].set(drug_emb.astype(dtype))

    tm = tn = tile
    grid = (2, n_pad // tm, n_pad // tn)

    kernel = functools.partial(_corr_sim_kernel, d_true=d, scale=scale)
    sims = pl.pallas_call(
        kernel,
        out_shape=jax.ShapeDtypeStruct((2, n_pad, n_pad), jnp.float32),
        grid=grid,
        in_specs=[
            # Row block i: index_map ignores j, so the block stays VMEM
            # resident across the inner output axis.
            pl.BlockSpec((None, tm, d_pad), lambda b, i, j: (b, i, 0)),
            # Row block j (same padded slab, different view).
            pl.BlockSpec((None, tn, d_pad), lambda b, i, j: (b, j, 0)),
        ],
        out_specs=pl.BlockSpec((None, tm, tn), lambda b, i, j: (b, i, j)),
        compiler_params=pltpu.CompilerParams(
            # Every output tile is written exactly once -> all axes parallel;
            # lets v7x's two TensorCores split the output grid.
            dimension_semantics=("parallel", "parallel", "parallel")),
    )(xb, xb)

    cell_sim = sims[0, :n_c, :n_c]
    drug_sim = sims[1, :n_d, :n_d]
    return cell_sim, drug_sim


class GDecoderSim:
    """JAX/Pallas equivalent of the PyTorch GDecoder_sim decoder module."""

    def __init__(self, gamma):
        # gamma is stored (as in the PyTorch module) but the forward uses the
        # hardcoded *15 scale, matching the reference semantics exactly.
        self.gamma = gamma

    def __call__(self, cell_emb, drug_emb):
        return gdecoder_sim(cell_emb, drug_emb, scale=15.0)


def _reference(x, scale=15.0):
    """Pure-JAX reference (exact divide path) for correctness checking."""
    x = x.astype(jnp.float32)
    xc = x - jnp.mean(x, axis=1, keepdims=True)
    num = xc @ xc.T
    norm = jnp.sqrt(jnp.sum(xc * xc, axis=1, keepdims=True))
    return jax.nn.sigmoid((num / (norm * norm.T)) * scale)


if __name__ == "__main__":
    key = jax.random.PRNGKey(0)
    k_cell, k_drug = jax.random.split(key)

    # Small, deterministic example embeddings (n_samples, hidden).
    cell_emb = jax.random.normal(k_cell, (16, 32), dtype=jnp.float32)
    drug_emb = jax.random.normal(k_drug, (8, 32), dtype=jnp.float32)

    decoder = GDecoderSim(gamma=15)
    cell_sim, drug_sim = decoder(cell_emb, drug_emb)
    jax.block_until_ready((cell_sim, drug_sim))

    # Sanity check against the pure-JAX reference.
    ref_cell = _reference(cell_emb)
    ref_drug = _reference(drug_emb)
    assert cell_sim.shape == (16, 16) and drug_sim.shape == (8, 8)
    assert jnp.allclose(cell_sim, ref_cell, atol=2e-5, rtol=2e-5)
    assert jnp.allclose(drug_sim, ref_drug, atol=2e-5, rtol=2e-5)

    print("KERNEL_OK")
</pallas_src>

<mosaic_0001>
module attributes {stable_mosaic.version = 11 : i64} {
  func.func @_corr_sim_kernel(%arg0: i32, %arg1: i32, %arg2: i32, %arg3: memref<1x128x128xf32, #tpu.memory_space<vmem>>, %arg4: memref<1x128x128xf32, #tpu.memory_space<vmem>>, %arg5: memref<1x128x128xf32, #tpu.memory_space<vmem>>) attributes {dimension_semantics = [#tpu.dimension_semantics<parallel>, #tpu.dimension_semantics<parallel>, #tpu.dimension_semantics<parallel>], iteration_bounds = array<i64: 2, 1, 1>, scalar_prefetch = 0 : i64, scratch_operands = 0 : i64, tpu.core_type = #tpu.core_type<tc>, window_params = [{transform_indices = @transform_0, window_bounds = array<i64: 1, 128, 128>}, {transform_indices = @transform_1, window_bounds = array<i64: 1, 128, 128>}, {transform_indices = @transform_2, window_bounds = array<i64: 1, 128, 128>}]} {
    %c0 = arith.constant 0 : index
    %c0_0 = arith.constant 0 : index
    %c0_1 = arith.constant 0 : index
    %0 = vector.load %arg3[%c0, %c0_0, %c0_1] : memref<1x128x128xf32, #tpu.memory_space<vmem>>, vector<1x128x128xf32>
    %1 = vector.shape_cast %0 : vector<1x128x128xf32> to vector<128x128xf32>
    %cst = arith.constant dense<0.000000e+00> : vector<128xf32>
    %2 = vector.multi_reduction <add>, %1, %cst [1] : vector<128x128xf32> to vector<128xf32>
    %3 = vector.shape_cast %2 : vector<128xf32> to vector<128x1xf32>
    %cst_2 = arith.constant 3.125000e-02 : f32
    %4 = vector.broadcast %cst_2 : f32 to vector<128x1xf32>
    %5 = arith.mulf %3, %4 : vector<128x1xf32>
    %6 = tpu.iota {dimensions = array<i32: 1>} : vector<128x128xi32>
    %c32_i32 = arith.constant 32 : i32
    %7 = vector.broadcast %c32_i32 : i32 to vector<128x128xi32>
    %8 = arith.cmpi slt, %6, %7 : vector<128x128xi32>
    %9 = vector.broadcast %5 : vector<128x1xf32> to vector<128x128xf32>
    %10 = arith.subf %1, %9 : vector<128x128xf32>
    %cst_3 = arith.constant 0.000000e+00 : f32
    %11 = vector.broadcast %cst_3 : f32 to vector<128x128xf32>
    %12 = arith.select %8, %10, %11 : vector<128x128xi1>, vector<128x128xf32>
    %13 = arith.mulf %12, %12 : vector<128x128xf32>
    %cst_4 = arith.constant dense<0.000000e+00> : vector<128xf32>
    %14 = vector.multi_reduction <add>, %13, %cst_4 [1] : vector<128x128xf32> to vector<128xf32>
    %15 = vector.shape_cast %14 : vector<128xf32> to vector<128x1xf32>
    %16 = math.rsqrt %15 : vector<128x1xf32>
    %c0_5 = arith.constant 0 : index
    %c0_6 = arith.constant 0 : index
    %c0_7 = arith.constant 0 : index
    %17 = vector.load %arg4[%c0_5, %c0_6, %c0_7] : memref<1x128x128xf32, #tpu.memory_space<vmem>>, vector<1x128x128xf32>
    %18 = vector.shape_cast %17 : vector<1x128x128xf32> to vector<128x128xf32>
    %cst_8 = arith.constant dense<0.000000e+00> : vector<128xf32>
    %19 = vector.multi_reduction <add>, %18, %cst_8 [1] : vector<128x128xf32> to vector<128xf32>
    %20 = vector.shape_cast %19 : vector<128xf32> to vector<128x1xf32>
    %cst_9 = arith.constant 3.125000e-02 : f32
    %21 = vector.broadcast %cst_9 : f32 to vector<128x1xf32>
    %22 = arith.mulf %20, %21 : vector<128x1xf32>
    %23 = tpu.iota {dimensions = array<i32: 1>} : vector<128x128xi32>
    %c32_i32_10 = arith.constant 32 : i32
    %24 = vector.broadcast %c32_i32_10 : i32 to vector<128x128xi32>
    %25 = arith.cmpi slt, %23, %24 : vector<128x128xi32>
    %26 = vector.broadcast %22 : vector<128x1xf32> to vector<128x128xf32>
    %27 = arith.subf %18, %26 : vector<128x128xf32>
    %cst_11 = arith.constant 0.000000e+00 : f32
    %28 = vector.broadcast %cst_11 : f32 to vector<128x128xf32>
    %29 = arith.select %25, %27, %28 : vector<128x128xi1>, vector<128x128xf32>
    %30 = arith.mulf %29, %29 : vector<128x128xf32>
    %cst_12 = arith.constant dense<0.000000e+00> : vector<128xf32>
    %31 = vector.multi_reduction <add>, %30, %cst_12 [1] : vector<128x128xf32> to vector<128xf32>
    %32 = vector.shape_cast %31 : vector<128xf32> to vector<128x1xf32>
    %33 = math.rsqrt %32 : vector<128x1xf32>
    %cst_13 = arith.constant dense<0.000000e+00> : vector<128x128xf32>
    %34 = tpu.matmul %12, %29, %cst_13 {dimension_numbers = #tpu.dot_dimension_numbers<[1], [1], [0], [0], [0, 0, 1, 0], [], []>} : vector<128x128xf32>, vector<128x128xf32>, vector<128x128xf32> -> vector<128x128xf32>
    %cst_14 = arith.constant 1.500000e+01 : f32
    %35 = vector.broadcast %cst_14 : f32 to vector<128x1xf32>
    %36 = arith.mulf %16, %35 : vector<128x1xf32>
    %37 = vector.broadcast %36 : vector<128x1xf32> to vector<128x128xf32>
    %38 = arith.mulf %34, %37 : vector<128x128xf32>
    %39 = vector.shape_cast %33 : vector<128x1xf32> to vector<1x128xf32>
    %40 = vector.broadcast %39 : vector<1x128xf32> to vector<128x128xf32>
    %41 = arith.mulf %38, %40 : vector<128x128xf32>
    %42 = arith.negf %41 : vector<128x128xf32>
    %43 = math.exp %42 : vector<128x128xf32>
    %cst_15 = arith.constant 1.000000e+00 : f32
    %44 = vector.broadcast %cst_15 : f32 to vector<128x128xf32>
    %45 = arith.addf %44, %43 : vector<128x128xf32>
    %46 = arith.divf %44, %45 : vector<128x128xf32>
    %c0_16 = arith.constant 0 : index
    %c0_17 = arith.constant 0 : index
    %c0_18 = arith.constant 0 : index
    %47 = vector.load %arg5[%c0_16, %c0_17, %c0_18] : memref<1x128x128xf32, #tpu.memory_space<vmem>>, vector<1x128x128xf32>
    %48 = vector.shape_cast %47 : vector<1x128x128xf32> to vector<128x128xf32>
    %49 = vector.shape_cast %46 : vector<128x128xf32> to vector<1x128x128xf32>
    tpu.vector_store %arg5[%c0_16, %c0_17, %c0_18], %49 {strides = array<i32>} : memref<1x128x128xf32, #tpu.memory_space<vmem>>, vector<1x128x128xf32>,
    return
  }
  func.func @transform_0(%arg0: i32, %arg1: i32, %arg2: i32) -> (i32, i32, i32) {
    %c0_i32 = arith.constant 0 : i32
    %c0_i32_0 = arith.constant 0 : i32
    return %arg0, %arg1, %c0_i32 : i32, i32, i32
  }
  func.func @transform_1(%arg0: i32, %arg1: i32, %arg2: i32) -> (i32, i32, i32) {
    %c0_i32 = arith.constant 0 : i32
    %c0_i32_0 = arith.constant 0 : i32
    return %arg0, %arg2, %c0_i32 : i32, i32, i32
  }
  func.func @transform_2(%arg0: i32, %arg1: i32, %arg2: i32) -> (i32, i32, i32) {
    %c0_i32 = arith.constant 0 : i32
    return %arg0, %arg1, %arg2 : i32, i32, i32
  }
}

</mosaic_0001>

<llo_original>
// kernel: tpu_custom_call.1
$region0: #{tpu_custom_call.1}
  #allocation0 [shape = 'u32[]', space=smem, size = 0x4, offset = 0x4, fixed_abs, tag = 'smem constant byte address 0x4 - core index']
  #allocation1 [shape = 'u32[144,128]{1,0:T(1,128)}', space=vmem, size = 0x12000, scoped, tag = 'internal scratch']
  %s0 = inlined_call_operand.hbm [shape: f32[2,128,128], index: 0, kind: input, shape index: {}]
  %s1 = inlined_call_operand.hbm [shape: f32[2,128,128], index: 1, kind: input, shape index: {}]
  %s2 = inlined_call_operand.hbm [shape: f32[2,128,128], index: 2, kind: output, shape index: {}]
  %s3 = sld [smem:[#allocation0]]
  $region49: #{tpu_custom_call.1} parent=0
    _
  %s5 = ssub.s32 1, %s3
  %s6 = scalar_select 0, %s5, %s3
  $region1: #{tpu_custom_call.1} parent=0
    #allocation2 [shape = 'u8[131072]{0}', space=vmem, size = 0x20000, scoped, tag = 'input window, operand 0']
    #allocation3 [shape = 's32[2]{0}', space=sflag, size = 0x8, scoped, tag = 'scoped memory for tpu_custom_call.1']
    #allocation4 [shape = 's32[2]{0}', space=sflag, size = 0x8, scoped, tag = 'scoped memory for tpu_custom_call.1']
    #allocation5 [shape = 'u8[131072]{0}', space=vmem, size = 0x20000, scoped, tag = 'input window, operand 1']
    #allocation6 [shape = 's32[2]{0}', space=sflag, size = 0x8, scoped, tag = 'scoped memory for tpu_custom_call.1']
    #allocation7 [shape = 'u8[131072]{0}', space=vmem, size = 0x20000, scoped, tag = 'output window, operand 0']
    %7 = vsyncpa [#allocation3], 0
    %s8 = scalar_lea.sflag [#allocation3], 1
    %9 = vsyncpa %s8, 0
    %10 = vsyncpa [#allocation6], 0
    %s11 = scalar_lea.sflag [#allocation6], 1
    %12 = vsyncpa %s11, 0
    %13 = vsyncpa [#allocation4], 0
    %s14 = scalar_lea.sflag [#allocation4], 1
    %15 = vsyncpa %s14, 0
    loop: start=0, step=1, limit=4
    $region2: #{tpu_custom_call.1} parent=1 // loop_pre_header
      _
    $region3: #{tpu_custom_call.1} parent=1 // loop_header
      %s17 = sphi 0, %s21
      %p18 = scmp.ge.s32.totalorder %s17, 4
      %s24 = sphi 0, %s43
      %s25 = sphi 0, %s39
      %s26 = sphi 0, %s35
      %s27 = sphi 0, %s24
      %s28 = sphi 0, %s25
      %s29 = sphi 0, %s26
      %s30 = sphi 0, %s27
      %s31 = sphi 0, %s28
      %s32 = sphi 0, %s29
      %s48 = sphi 0, %s50
      %s51 = sphi 0, %s48
      %s52 = sphi 0, %s51
      %s68 = sphi 0, %s52
      %s76 = sphi 0, %s78
      %s79 = sphi 0, %s76
      %s80 = sphi 0, %s79
      %s96 = sphi 0, %s80
      %s106 = sphi 0, %s108
      %s109 = sphi 0, %s106
      %s110 = sphi 0, %s109
      %s126 = sphi 0, %s110
    $region4: #{tpu_custom_call.1} parent=1 // loop_header_branch
      %20 = sbr.rel (%p18) target = $region8
    $region5: #{tpu_custom_call.1} parent=1 // loop_body
      %s22 = ssub.s32 %s17, 1
      %s23 = ssub.s32 %s17, 2
      %s33 = sadd.s32 1, %s26
      %p34 = scmp.ge.s32.totalorder %s33, 1
      %s35 = scalar_select %p34, 0, %s33
      %s36 = sadd.s32 1, %s25
      %s37 = scalar_select %p34, %s36, %s25
      %p38 = scmp.ge.s32.totalorder %s37, 1
      %s39 = scalar_select %p38, 0, %s37
      %s40 = sadd.s32 1, %s24
      %s41 = scalar_select %p38, %s40, %s24
      %p42 = scmp.ge.s32.totalorder %s41, 2
      %s43 = scalar_select %p42, 0, %s41
      %s44 = ssub.s32 %s24, %s43
      %s45 = ssub.s32 %s25, %s39
      %s46 = sor.u32 %s44, %s45
      %p47 = scmp.eq.s32.totalorder %s46, 0
      %s49 = sadd.s32 %s48, 1
      %s50 = scalar_select %p47, %s48, %s49
      %p53 = pneg %p47
      %p54 = scmp.eq.s32.totalorder %s17, 1
      %p55 = por %p53, %p54
      %p56 = scmp.ne.s32.totalorder %s48, %s51
      %p57 = scmp.eq.s32.totalorder %s17, 0
      %p58 = por %p56, %p57
      %p59 = scmp.ne.s32.totalorder %s48, %s51
      %p60 = scmp.eq.s32.totalorder %s22, 1
      %p61 = por %p59, %p60
      %p62 = scmp.ne.s32.totalorder %s51, %s52
      %p63 = scmp.eq.s32.totalorder %s22, 0
      %p64 = por %p62, %p63
      %p65 = scmp.ne.s32.totalorder %s51, %s52
      %p66 = scmp.eq.s32.totalorder %s23, 1
      %p67 = por %p65, %p66
      %p69 = scmp.ne.s32.totalorder %s52, %s68
      %p70 = scmp.eq.s32.totalorder %s23, 0
      %p71 = por %p69, %p70
      %s72 = ssub.s32 %s24, %s43
      %s73 = ssub.s32 %s26, %s35
      %s74 = sor.u32 %s72, %s73
      %p75 = scmp.eq.s32.totalorder %s74, 0
      %s77 = sadd.s32 %s76, 1
      %s78 = scalar_select %p75, %s76, %s77
      %p81 = pneg %p75
      %p82 = scmp.eq.s32.totalorder %s17, 1
      %p83 = por %p81, %p82
      %p84 = scmp.ne.s32.totalorder %s76, %s79
      %p85 = scmp.eq.s32.totalorder %s17, 0
      %p86 = por %p84, %p85
      %p87 = scmp.ne.s32.totalorder %s76, %s79
      %p88 = scmp.eq.s32.totalorder %s22, 1
      %p89 = por %p87, %p88
      %p90 = scmp.ne.s32.totalorder %s79, %s80
      %p91 = scmp.eq.s32.totalorder %s22, 0
      %p92 = por %p90, %p91
      %p93 = scmp.ne.s32.totalorder %s79, %s80
      %p94 = scmp.eq.s32.totalorder %s23, 1
      %p95 = por %p93, %p94
      %p97 = scmp.ne.s32.totalorder %s80, %s96
      %p98 = scmp.eq.s32.totalorder %s23, 0
      %p99 = por %p97, %p98
      %s100 = ssub.s32 %s24, %s43
      %s101 = ssub.s32 %s25, %s39
      %s102 = sor.u32 %s100, %s101
      %s103 = ssub.s32 %s26, %s35
      %s104 = sor.u32 %s102, %s103
      %p105 = scmp.eq.s32.totalorder %s104, 0
      %s107 = sadd.s32 %s106, 1
      %s108 = scalar_select %p105, %s106, %s107
      %p111 = pneg %p105
      %p112 = scmp.eq.s32.totalorder %s17, 1
      %p113 = por %p111, %p112
      %p114 = scmp.ne.s32.totalorder %s106, %s109
      %p115 = scmp.eq.s32.totalorder %s17, 0
      %p116 = por %p114, %p115
      %p117 = scmp.ne.s32.totalorder %s106, %s109
      %p118 = scmp.eq.s32.totalorder %s22, 1
      %p119 = por %p117, %p118
      %p120 = scmp.ne.s32.totalorder %s109, %s110
      %p121 = scmp.eq.s32.totalorder %s22, 0
      %p122 = por %p120, %p121
      %p123 = scmp.ne.s32.totalorder %s109, %s110
      %p124 = scmp.eq.s32.totalorder %s23, 1
      %p125 = por %p123, %p124
      %p127 = scmp.ne.s32.totalorder %s110, %s126
      %p128 = scmp.eq.s32.totalorder %s23, 0
      %p129 = por %p127, %p128
      %p130 = scmp.le.s32.totalorder 1, %s17
      %p131 = scmp.lt.s32.totalorder %s17, 3
      %p132 = pnand %p130, %p131
      %p133 = pneg %p132
      // Predicated region
      $region9: #{tpu_custom_call.1} parent=5 // pred_check
        _
      $region10: #{tpu_custom_call.1} parent=5 // pred_check_branch
        %135 = sbr.rel (%p132) target = $region12
      $region11: #{tpu_custom_call.1} parent=5 // pred_region
        %s136 = ssub.s32 %s17, 1
      $region12: #{tpu_custom_call.1} parent=5 // pred_fallthru
        _
      %p137 = scmp.lt.s32.totalorder %s17, 2
      // Predicated region
      $region13: #{tpu_custom_call.1} parent=5 // pred_check
        %p138 = pneg %p137
      $region14: #{tpu_custom_call.1} parent=5 // pred_check_branch
        %140 = sbr.rel (%p138) target = $region16
      $region15: #{tpu_custom_call.1} parent=5 // pred_region
        // Predicated region
        $region17: #{tpu_custom_call.1} parent=15 // pred_check
          %p141 = pneg %p58
        $region18: #{tpu_custom_call.1} parent=15 // pred_check_branch
          %143 = sbr.rel (%p141) target = $region20
        $region19: #{tpu_custom_call.1} parent=15 // pred_region
          %s144 = sand.u32 %s48, 1
          %s145 = scalar_lea.sflag [#allocation3], %s144
          %s146 = sand.u32 %s48, 1
          %s147 = smul.addr %s146, 128
          %s148 = scalar_lea.vmem [#allocation2], %s147
          %s149 = smul.u32 16, %s25
          %s151 = ssub.s32 2048, 2048
          %152 = vsyncadd %s145, %s151
          %s153 = smul.addr %s24, 16
          %s154 = sadd.s32 %s149, %s153
          %s155 = smul.addr %s154, 128
          %s156 = scalar_lea.hbm %s0, %s155
          %s157 = sshll.u32 %s148, 4
          %s158 = int_to_ptr.vmem [resolvable:$true] %s157
          %163 = dma.hbm_to_vmem [thread:$0]  %s156, 2048, %s158, %s145, 128, 128, 8
        $region20: #{tpu_custom_call.1} parent=15 // pred_fallthru
          _
        // Predicated region
        $region21: #{tpu_custom_call.1} parent=15 // pred_check
          %p164 = pneg %p86
        $region22: #{tpu_custom_call.1} parent=15 // pred_check_branch
          %166 = sbr.rel (%p164) target = $region24
        $region23: #{tpu_custom_call.1} parent=15 // pred_region
          %s167 = sand.u32 %s76, 1
          %s168 = scalar_lea.sflag [#allocation6], %s167
          %s169 = sand.u32 %s76, 1
          %s170 = smul.addr %s169, 128
          %s171 = scalar_lea.vmem [#allocation5], %s170
          %s172 = smul.u32 16, %s26
          %s174 = ssub.s32 2048, 2048
          %175 = vsyncadd %s168, %s174
          %s176 = smul.addr %s24, 16
          %s177 = sadd.s32 %s172, %s176
          %s178 = smul.addr %s177, 128
          %s179 = scalar_lea.hbm %s1, %s178
          %s180 = sshll.u32 %s171, 4
          %s181 = int_to_ptr.vmem [resolvable:$true] %s180
          %186 = dma.hbm_to_vmem [thread:$0]  %s179, 2048, %s181, %s168, 128, 128, 8
        $region24: #{tpu_custom_call.1} parent=15 // pred_fallthru
          _
      $region16: #{tpu_custom_call.1} parent=5 // pred_fallthru
        _
      %p187 = scmp.le.s32.totalorder 1, %s17
      %p188 = scmp.lt.s32.totalorder %s17, 3
      %p189 = pnand %p187, %p188
      %p190 = pneg %p189
      // Predicated region
      $region25: #{tpu_custom_call.1} parent=5 // pred_check
        _
      $region26: #{tpu_custom_call.1} parent=5 // pred_check_branch
        %192 = sbr.rel (%p189) target = $region28
      $region27: #{tpu_custom_call.1} parent=5 // pred_region
        %s193 = ssub.s32 %s17, 1
        %s194 = sand.u32 %s51, 1
        %s195 = scalar_lea.sflag [#allocation3], %s194
        %s196 = sand.u32 %s51, 1
        %s197 = smul.addr %s196, 128
        %s198 = scalar_lea.vmem [#allocation2], %s197
        // Predicated region
        $region29: #{tpu_custom_call.1} parent=27 // pred_check
          %p199 = pneg %p64
        $region30: #{tpu_custom_call.1} parent=27 // pred_check_branch
          %201 = sbr.rel (%p199) target = $region32
        $region31: #{tpu_custom_call.1} parent=27 // pred_region
          %202 = dma.done %s195, 2048
        $region32: #{tpu_custom_call.1} parent=27 // pred_fallthru
          _
        %s203 = sand.u32 %s79, 1
        %s204 = scalar_lea.sflag [#allocation6], %s203
        %s205 = sand.u32 %s79, 1
        %s206 = smul.addr %s205, 128
        %s207 = scalar_lea.vmem [#allocation5], %s206
        // Predicated region
        $region33: #{tpu_custom_call.1} parent=27 // pred_check
          %p208 = pneg %p92
        $region34: #{tpu_custom_call.1} parent=27 // pred_check_branch
          %210 = sbr.rel (%p208) target = $region36
        $region35: #{tpu_custom_call.1} parent=27 // pred_region
          %211 = dma.done %s204, 2048
        $region36: #{tpu_custom_call.1} parent=27 // pred_fallthru
          _
        %s212 = sand.u32 %s51, 1
        %s213 = scalar_lea.sflag [#allocation3], %s212
        %s214 = sand.u32 %s51, 1
        %s215 = smul.addr %s214, 128
        %s216 = scalar_lea.vmem [#allocation2], %s215
        %p217 = pneg %p64
        %p218 = pneg %p61
        %s219 = sand.u32 %s79, 1
        %s220 = scalar_lea.sflag [#allocation6], %s219
        %s221 = sand.u32 %s79, 1
        %s222 = smul.addr %s221, 128
        %s223 = scalar_lea.vmem [#allocation5], %s222
        %p224 = pneg %p92
        %p225 = pneg %p89
        %p226 = pneg %p122
        %p227 = pneg %p119
        %s228 = sand.u32 %s109, 1
        %s229 = scalar_lea.sflag [#allocation4], %s228
        %s230 = sand.u32 %s109, 1
        %s231 = smul.addr %s230, 128
        %s232 = scalar_lea.vmem [#allocation7], %s231
        %s233 = smul.u32 16, %s28
        %s234 = smul.u32 16, %s29
        %s235 = smul.u32 16, %s28
        %v236 = vld [vmem:[%s198] sm:$0xff]
        %v237 = vld [vmem:[%s198 + $0x8] sm:$0xff]
        %v238 = vld [vmem:[%s198 + $0x10] sm:$0xff]
        %v239 = vld [vmem:[%s198 + $0x18] sm:$0xff]
        %v240 = vld [vmem:[%s198 + $0x20] sm:$0xff]
        %v241 = vld [vmem:[%s198 + $0x28] sm:$0xff]
        %v242 = vld [vmem:[%s198 + $0x30] sm:$0xff]
        %v243 = vld [vmem:[%s198 + $0x38] sm:$0xff]
        %v244 = vld [vmem:[%s198 + $0x40] sm:$0xff]
        %v245 = vld [vmem:[%s198 + $0x48] sm:$0xff]
        %v246 = vld [vmem:[%s198 + $0x50] sm:$0xff]
        %v247 = vld [vmem:[%s198 + $0x58] sm:$0xff]
        %v248 = vld [vmem:[%s198 + $0x60] sm:$0xff]
        %v249 = vld [vmem:[%s198 + $0x68] sm:$0xff]
        %v250 = vld [vmem:[%s198 + $0x70] sm:$0xff]
        %v251 = vld [vmem:[%s198 + $0x78] sm:$0xff]
        %252 = vadd.xlane.f32.xlu0 %v236
        %v253 = vpop.xlane.xlu0 %252
        %254 = vadd.xlane.f32.xlu0 %v237
        %v255 = vpop.xlane.xlu0 %254
        %256 = vadd.xlane.f32.xlu0 %v238
        %v257 = vpop.xlane.xlu0 %256
        %258 = vadd.xlane.f32.xlu0 %v239
        %v259 = vpop.xlane.xlu0 %258
        %260 = vadd.xlane.f32.xlu0 %v240
        %v261 = vpop.xlane.xlu0 %260
        %262 = vadd.xlane.f32.xlu0 %v241
        %v263 = vpop.xlane.xlu0 %262
        %264 = vadd.xlane.f32.xlu0 %v242
        %v265 = vpop.xlane.xlu0 %264
        %266 = vadd.xlane.f32.xlu0 %v243
        %v267 = vpop.xlane.xlu0 %266
        %268 = vadd.xlane.f32.xlu0 %v244
        %v269 = vpop.xlane.xlu0 %268
        %270 = vadd.xlane.f32.xlu0 %v245
        %v271 = vpop.xlane.xlu0 %270
        %272 = vadd.xlane.f32.xlu0 %v246
        %v273 = vpop.xlane.xlu0 %272
        %274 = vadd.xlane.f32.xlu0 %v247
        %v275 = vpop.xlane.xlu0 %274
        %276 = vadd.xlane.f32.xlu0 %v248
        %v277 = vpop.xlane.xlu0 %276
        %278 = vadd.xlane.f32.xlu0 %v249
        %v279 = vpop.xlane.xlu0 %278
        %280 = vadd.xlane.f32.xlu0 %v250
        %v281 = vpop.xlane.xlu0 %280
        %282 = vadd.xlane.f32.xlu0 %v251
        %v283 = vpop.xlane.xlu0 %282
        %v284 = vmul.f32 %v253, 0.03125
        %v285 = vmul.f32 %v255, 0.03125
        %v286 = vmul.f32 %v257, 0.03125
        %v287 = vmul.f32 %v259, 0.03125
        %v288 = vmul.f32 %v261, 0.03125
        %v289 = vmul.f32 %v263, 0.03125
        %v290 = vmul.f32 %v265, 0.03125
        %v291 = vmul.f32 %v267, 0.03125
        %v292 = vmul.f32 %v269, 0.03125
        %v293 = vmul.f32 %v271, 0.03125
        %v294 = vmul.f32 %v273, 0.03125
        %v295 = vmul.f32 %v275, 0.03125
        %v296 = vmul.f32 %v277, 0.03125
        %v297 = vmul.f32 %v279, 0.03125
        %v298 = vmul.f32 %v281, 0.03125
        %v299 = vmul.f32 %v283, 0.03125
        %v300 = vlaneseq
        %v301 = vand.u32 %v300, 127
        %vm302 = vcmp.lt.s32.totalorder %v301, 32
        %v303 = vsub.f32 %v236, %v284
        %v304 = vsub.f32 %v237, %v285
        %v305 = vsub.f32 %v238, %v286
        %v306 = vsub.f32 %v239, %v287
        %v307 = vsub.f32 %v240, %v288
        %v308 = vsub.f32 %v241, %v289
        %v309 = vsub.f32 %v242, %v290
        %v310 = vsub.f32 %v243, %v291
        %v311 = vsub.f32 %v244, %v292
        %v312 = vsub.f32 %v245, %v293
        %v313 = vsub.f32 %v246, %v294
        %v314 = vsub.f32 %v247, %v295
        %v315 = vsub.f32 %v248, %v296
        %v316 = vsub.f32 %v249, %v297
        %v317 = vsub.f32 %v250, %v298
        %v318 = vsub.f32 %v251, %v299
        %v319 = vsel %vm302, %v303, 0.0
        %v320 = vsel %vm302, %v304, 0.0
        %v321 = vsel %vm302, %v305, 0.0
        %v322 = vsel %vm302, %v306, 0.0
        %v323 = vsel %vm302, %v307, 0.0
        %v324 = vsel %vm302, %v308, 0.0
        %v325 = vsel %vm302, %v309, 0.0
        %v326 = vsel %vm302, %v310, 0.0
        %v327 = vsel %vm302, %v311, 0.0
        %v328 = vsel %vm302, %v312, 0.0
        %v329 = vsel %vm302, %v313, 0.0
        %v330 = vsel %vm302, %v314, 0.0
        %v331 = vsel %vm302, %v315, 0.0
        %v332 = vsel %vm302, %v316, 0.0
        %v333 = vsel %vm302, %v317, 0.0
        %v334 = vsel %vm302, %v318, 0.0
        %v335 = vmul.f32 %v319, %v319
        %v336 = vmul.f32 %v320, %v320
        %v337 = vmul.f32 %v321, %v321
        %v338 = vmul.f32 %v322, %v322
        %v339 = vmul.f32 %v323, %v323
        %v340 = vmul.f32 %v324, %v324
        %v341 = vmul.f32 %v325, %v325
        %v342 = vmul.f32 %v326, %v326
        %v343 = vmul.f32 %v327, %v327
        %v344 = vmul.f32 %v328, %v328
        %v345 = vmul.f32 %v329, %v329
        %v346 = vmul.f32 %v330, %v330
        %v347 = vmul.f32 %v331, %v331
        %v348 = vmul.f32 %v332, %v332
        %v349 = vmul.f32 %v333, %v333
        %v350 = vmul.f32 %v334, %v334
        %351 = vadd.xlane.f32.xlu0 %v335
        %v352 = vpop.xlane.xlu0 %351
        %353 = vadd.xlane.f32.xlu0 %v336
        %v354 = vpop.xlane.xlu0 %353
        %355 = vadd.xlane.f32.xlu0 %v337
        %v356 = vpop.xlane.xlu0 %355
        %357 = vadd.xlane.f32.xlu0 %v338
        %v358 = vpop.xlane.xlu0 %357
        %359 = vadd.xlane.f32.xlu0 %v339
        %v360 = vpop.xlane.xlu0 %359
        %361 = vadd.xlane.f32.xlu0 %v340
        %v362 = vpop.xlane.xlu0 %361
        %363 = vadd.xlane.f32.xlu0 %v341
        %v364 = vpop.xlane.xlu0 %363
        %365 = vadd.xlane.f32.xlu0 %v342
        %v366 = vpop.xlane.xlu0 %365
        %367 = vadd.xlane.f32.xlu0 %v343
        %v368 = vpop.xlane.xlu0 %367
        %369 = vadd.xlane.f32.xlu0 %v344
        %v370 = vpop.xlane.xlu0 %369
        %371 = vadd.xlane.f32.xlu0 %v345
        %v372 = vpop.xlane.xlu0 %371
        %373 = vadd.xlane.f32.xlu0 %v346
        %v374 = vpop.xlane.xlu0 %373
        %375 = vadd.xlane.f32.xlu0 %v347
        %v376 = vpop.xlane.xlu0 %375
        %377 = vadd.xlane.f32.xlu0 %v348
        %v378 = vpop.xlane.xlu0 %377
        %379 = vadd.xlane.f32.xlu0 %v349
        %v380 = vpop.xlane.xlu0 %379
        %381 = vadd.xlane.f32.xlu0 %v350
        %v382 = vpop.xlane.xlu0 %381
        %v383 = vrsqrt.pop %v352
        %v384 = vrsqrt.pop %v354
        %v385 = vrsqrt.pop %v356
        %v386 = vrsqrt.pop %v358
        %v387 = vrsqrt.pop %v360
        %v388 = vrsqrt.pop %v362
        %v389 = vrsqrt.pop %v364
        %v390 = vrsqrt.pop %v366
        %v391 = vrsqrt.pop %v368
        %v392 = vrsqrt.pop %v370
        %v393 = vrsqrt.pop %v372
        %v394 = vrsqrt.pop %v374
        %v395 = vrsqrt.pop %v376
        %v396 = vrsqrt.pop %v378
        %v397 = vrsqrt.pop %v380
        %v398 = vrsqrt.pop %v382
        %v399 = vld [vmem:[%s207] sm:$0xff]
        %v400 = vld [vmem:[%s207 + $0x8] sm:$0xff]
        %v401 = vld [vmem:[%s207 + $0x10] sm:$0xff]
        %v402 = vld [vmem:[%s207 + $0x18] sm:$0xff]
        %v403 = vld [vmem:[%s207 + $0x20] sm:$0xff]
        %v404 = vld [vmem:[%s207 + $0x28] sm:$0xff]
        %v405 = vld [vmem:[%s207 + $0x30] sm:$0xff]
        %v406 = vld [vmem:[%s207 + $0x38] sm:$0xff]
        %v407 = vld [vmem:[%s207 + $0x40] sm:$0xff]
        %v408 = vld [vmem:[%s207 + $0x48] sm:$0xff]
        %v409 = vld [vmem:[%s207 + $0x50] sm:$0xff]
        %v410 = vld [vmem:[%s207 + $0x58] sm:$0xff]
        %v411 = vld [vmem:[%s207 + $0x60] sm:$0xff]
        %v412 = vld [vmem:[%s207 + $0x68] sm:$0xff]
        %v413 = vld [vmem:[%s207 + $0x70] sm:$0xff]
        %v414 = vld [vmem:[%s207 + $0x78] sm:$0xff]
        %415 = vadd.xlane.f32.xlu0 %v399
        %v416 = vpop.xlane.xlu0 %415
        %417 = vadd.xlane.f32.xlu0 %v400
        %v418 = vpop.xlane.xlu0 %417
        %419 = vadd.xlane.f32.xlu0 %v401
        %v420 = vpop.xlane.xlu0 %419
        %421 = vadd.xlane.f32.xlu0 %v402
        %v422 = vpop.xlane.xlu0 %421
        %423 = vadd.xlane.f32.xlu0 %v403
        %v424 = vpop.xlane.xlu0 %423
        %425 = vadd.xlane.f32.xlu0 %v404
        %v426 = vpop.xlane.xlu0 %425
        %427 = vadd.xlane.f32.xlu0 %v405
        %v428 = vpop.xlane.xlu0 %427
        %429 = vadd.xlane.f32.xlu0 %v406
        %v430 = vpop.xlane.xlu0 %429
        %431 = vadd.xlane.f32.xlu0 %v407
        %v432 = vpop.xlane.xlu0 %431
        %433 = vadd.xlane.f32.xlu0 %v408
        %v434 = vpop.xlane.xlu0 %433
        %435 = vadd.xlane.f32.xlu0 %v409
        %v436 = vpop.xlane.xlu0 %435
        %437 = vadd.xlane.f32.xlu0 %v410
        %v438 = vpop.xlane.xlu0 %437
        %439 = vadd.xlane.f32.xlu0 %v411
        %v440 = vpop.xlane.xlu0 %439
        %441 = vadd.xlane.f32.xlu0 %v412
        %v442 = vpop.xlane.xlu0 %441
        %443 = vadd.xlane.f32.xlu0 %v413
        %v444 = vpop.xlane.xlu0 %443
        %445 = vadd.xlane.f32.xlu0 %v414
        %v446 = vpop.xlane.xlu0 %445
        %v447 = vmul.f32 %v416, 0.03125
        %v448 = vmul.f32 %v418, 0.03125
        %v449 = vmul.f32 %v420, 0.03125
        %v450 = vmul.f32 %v422, 0.03125
        %v451 = vmul.f32 %v424, 0.03125
        %v452 = vmul.f32 %v426, 0.03125
        %v453 = vmul.f32 %v428, 0.03125
        %v454 = vmul.f32 %v430, 0.03125
        %v455 = vmul.f32 %v432, 0.03125
        %v456 = vmul.f32 %v434, 0.03125
        %v457 = vmul.f32 %v436, 0.03125
        %v458 = vmul.f32 %v438, 0.03125
        %v459 = vmul.f32 %v440, 0.03125
        %v460 = vmul.f32 %v442, 0.03125
        %v461 = vmul.f32 %v444, 0.03125
        %v462 = vmul.f32 %v446, 0.03125
        %v463 = vsub.f32 %v399, %v447
        %v464 = vsub.f32 %v400, %v448
        %v465 = vsub.f32 %v401, %v449
        %v466 = vsub.f32 %v402, %v450
        %v467 = vsub.f32 %v403, %v451
        %v468 = vsub.f32 %v404, %v452
        %v469 = vsub.f32 %v405, %v453
        %v470 = vsub.f32 %v406, %v454
        %v471 = vsub.f32 %v407, %v455
        %v472 = vsub.f32 %v408, %v456
        %v473 = vsub.f32 %v409, %v457
        %v474 = vsub.f32 %v410, %v458
        %v475 = vsub.f32 %v411, %v459
        %v476 = vsub.f32 %v412, %v460
        %v477 = vsub.f32 %v413, %v461
        %v478 = vsub.f32 %v414, %v462
        %v479 = vsel %vm302, %v463, 0.0
        %v480 = vsel %vm302, %v464, 0.0
        %v481 = vsel %vm302, %v465, 0.0
        %v482 = vsel %vm302, %v466, 0.0
        %v483 = vsel %vm302, %v467, 0.0
        %v484 = vsel %vm302, %v468, 0.0
        %v485 = vsel %vm302, %v469, 0.0
        %v486 = vsel %vm302, %v470, 0.0
        %v487 = vsel %vm302, %v471, 0.0
        %v488 = vsel %vm302, %v472, 0.0
        %v489 = vsel %vm302, %v473, 0.0
        %v490 = vsel %vm302, %v474, 0.0
        %v491 = vsel %vm302, %v475, 0.0
        %v492 = vsel %vm302, %v476, 0.0
        %v493 = vsel %vm302, %v477, 0.0
        %v494 = vsel %vm302, %v478, 0.0
        %v495 = vmul.f32 %v479, %v479
        %v496 = vmul.f32 %v480, %v480
        %v497 = vmul.f32 %v481, %v481
        %v498 = vmul.f32 %v482, %v482
        %v499 = vmul.f32 %v483, %v483
        %v500 = vmul.f32 %v484, %v484
        %v501 = vmul.f32 %v485, %v485
        %v502 = vmul.f32 %v486, %v486
        %v503 = vmul.f32 %v487, %v487
        %v504 = vmul.f32 %v488, %v488
        %v505 = vmul.f32 %v489, %v489
        %v506 = vmul.f32 %v490, %v490
        %v507 = vmul.f32 %v491, %v491
        %v508 = vmul.f32 %v492, %v492
        %v509 = vmul.f32 %v493, %v493
        %v510 = vmul.f32 %v494, %v494
        %511 = vadd.xlane.f32.xlu0 %v495
        %v512 = vpop.xlane.xlu0 %511
        %513 = vadd.xlane.f32.xlu0 %v496
        %v514 = vpop.xlane.xlu0 %513
        %515 = vadd.xlane.f32.xlu0 %v497
        %v516 = vpop.xlane.xlu0 %515
        %517 = vadd.xlane.f32.xlu0 %v498
        %v518 = vpop.xlane.xlu0 %517
        %519 = vadd.xlane.f32.xlu0 %v499
        %v520 = vpop.xlane.xlu0 %519
        %521 = vadd.xlane.f32.xlu0 %v500
        %v522 = vpop.xlane.xlu0 %521
        %523 = vadd.xlane.f32.xlu0 %v501
        %v524 = vpop.xlane.xlu0 %523
        %525 = vadd.xlane.f32.xlu0 %v502
        %v526 = vpop.xlane.xlu0 %525
        %527 = vadd.xlane.f32.xlu0 %v503
        %v528 = vpop.xlane.xlu0 %527
        %529 = vadd.xlane.f32.xlu0 %v504
        %v530 = vpop.xlane.xlu0 %529
        %531 = vadd.xlane.f32.xlu0 %v505
        %v532 = vpop.xlane.xlu0 %531
        %533 = vadd.xlane.f32.xlu0 %v506
        %v534 = vpop.xlane.xlu0 %533
        %535 = vadd.xlane.f32.xlu0 %v507
        %v536 = vpop.xlane.xlu0 %535
        %537 = vadd.xlane.f32.xlu0 %v508
        %v538 = vpop.xlane.xlu0 %537
        %539 = vadd.xlane.f32.xlu0 %v509
        %v540 = vpop.xlane.xlu0 %539
        %541 = vadd.xlane.f32.xlu0 %v510
        %v542 = vpop.xlane.xlu0 %541
        %v543 = vrsqrt.pop %v512
        %v544 = vrsqrt.pop %v514
        %v545 = vrsqrt.pop %v516
        %v546 = vrsqrt.pop %v518
        %v547 = vrsqrt.pop %v520
        %v548 = vrsqrt.pop %v522
        %v549 = vrsqrt.pop %v524
        %v550 = vrsqrt.pop %v526
        %v551 = vrsqrt.pop %v528
        %v552 = vrsqrt.pop %v530
        %v553 = vrsqrt.pop %v532
        %v554 = vrsqrt.pop %v534
        %v555 = vrsqrt.pop %v536
        %v556 = vrsqrt.pop %v538
        %v557 = vrsqrt.pop %v540
        %v558 = vrsqrt.pop %v542
        %559 = vmatprep.subr.mxu0 0.0
        %560 = vmatpush1.xpose.msra.mxu0 %v494
        %561 = vmatprep.subr.mxu0 0.0
        %562 = vmatpush1.xpose.msra.mxu0 %v493
        %563 = vmatprep.subr.mxu0 0.0
        %564 = vmatpush1.xpose.msra.mxu0 %v492
        %565 = vmatprep.subr.mxu0 0.0
        %566 = vmatpush1.xpose.msra.mxu0 %v491
        %567 = vmatprep.subr.mxu0 0.0
        %568 = vmatpush1.xpose.msra.mxu0 %v490
        %569 = vmatprep.subr.mxu0 0.0
        %570 = vmatpush1.xpose.msra.mxu0 %v489
        %571 = vmatprep.subr.mxu0 0.0
        %572 = vmatpush1.xpose.msra.mxu0 %v488
        %573 = vmatprep.subr.mxu0 0.0
        %574 = vmatpush1.xpose.msra.mxu0 %v487
        %575 = vmatprep.subr.mxu0 0.0
        %576 = vmatpush1.xpose.msra.mxu0 %v486
        %577 = vmatprep.subr.mxu0 0.0
        %578 = vmatpush1.xpose.msra.mxu0 %v485
        %579 = vmatprep.subr.mxu0 0.0
        %580 = vmatpush1.xpose.msra.mxu0 %v484
        %581 = vmatprep.subr.mxu0 0.0
        %582 = vmatpush1.xpose.msra.mxu0 %v483
        %583 = vmatprep.subr.mxu0 0.0
        %584 = vmatpush1.xpose.msra.mxu0 %v482
        %585 = vmatprep.subr.mxu0 0.0
        %586 = vmatpush1.xpose.msra.mxu0 %v481
        %587 = vmatprep.subr.mxu0 0.0
        %588 = vmatpush1.xpose.msra.mxu0 %v480
        %589 = vmatprep.subr.mxu0 0.0
        %590 = vmatpush1.xpose.msra.mxu0 %v479
        %591 = vmatprep.subr.mxu0 0.0
        %592 = vmatpush2.xpose.msra.mxu0 0.0
        %593 = vmatprep.subr.mxu0 0.0
        %594 = vmatpush2.xpose.msra.mxu0 0.0
        %595 = vmatprep.subr.mxu0 0.0
        %596 = vmatpush2.xpose.msra.mxu0 0.0
        %597 = vmatprep.subr.mxu0 0.0
        %598 = vmatpush2.xpose.msra.mxu0 0.0
        %599 = vmatprep.subr.mxu0 0.0
        %600 = vmatpush2.xpose.msra.mxu0 0.0
        %601 = vmatprep.subr.mxu0 0.0
        %602 = vmatpush2.xpose.msra.mxu0 0.0
        %603 = vmatprep.subr.mxu0 0.0
        %604 = vmatpush2.xpose.msra.mxu0 0.0
        %605 = vmatprep.subr.mxu0 0.0
        %606 = vmatpush2.xpose.msra.mxu0 0.0
        %607 = vmatprep.subr.mxu0 0.0
        %608 = vmatpush2.xpose.msra.mxu0 0.0
        %609 = vmatprep.subr.mxu0 0.0
        %610 = vmatpush2.xpose.msra.mxu0 0.0
        %611 = vmatprep.subr.mxu0 0.0
        %612 = vmatpush2.xpose.msra.mxu0 0.0
        %613 = vmatprep.subr.mxu0 0.0
        %614 = vmatpush2.xpose.msra.mxu0 0.0
        %615 = vmatprep.subr.mxu0 0.0
        %616 = vmatpush2.xpose.msra.mxu0 0.0
        %617 = vmatprep.subr.mxu0 0.0
        %618 = vmatpush2.xpose.msra.mxu0 0.0
        %619 = vmatprep.subr.mxu0 0.0
        %620 = vmatpush2.xpose.msra.mxu0 0.0
        %621 = vmatprep.subr.mxu0 0.0
        %622 = vmatpush2.xpose.msra.mxu0 0.0
        %623 = vmatprep.mubr.f32.mxu0 0.0
        %624 = vmatmul.mubr.f32.gmra.mxu0 %v319
        %v625 = vpop.f32.mrf.mxu0
        %v626 = vadd.f32 0.0, %v625
        %v627 = vpop.f32.mrf.mxu0
        %628 = vmatprep.mubr.f32.mxu0 0.0
        %629 = vmatmul.mubr.f32.gmra.mxu0 %v320
        %v630 = vpop.f32.mrf.mxu0
        %v631 = vadd.f32 0.0, %v630
        %v632 = vpop.f32.mrf.mxu0
        %633 = vmatprep.mubr.f32.mxu0 0.0
        %634 = vmatmul.mubr.f32.gmra.mxu0 %v321
        %v635 = vpop.f32.mrf.mxu0
        %v636 = vadd.f32 0.0, %v635
        %v637 = vpop.f32.mrf.mxu0
        %638 = vmatprep.mubr.f32.mxu0 0.0
        %639 = vmatmul.mubr.f32.gmra.mxu0 %v322
        %v640 = vpop.f32.mrf.mxu0
        %v641 = vadd.f32 0.0, %v640
        %v642 = vpop.f32.mrf.mxu0
        %643 = vmatprep.mubr.f32.mxu0 0.0
        %644 = vmatmul.mubr.f32.gmra.mxu0 %v323
        %v645 = vpop.f32.mrf.mxu0
        %v646 = vadd.f32 0.0, %v645
        %v647 = vpop.f32.mrf.mxu0
        %648 = vmatprep.mubr.f32.mxu0 0.0
        %649 = vmatmul.mubr.f32.gmra.mxu0 %v324
        %v650 = vpop.f32.mrf.mxu0
        %v651 = vadd.f32 0.0, %v650
        %v652 = vpop.f32.mrf.mxu0
        %653 = vmatprep.mubr.f32.mxu0 0.0
        %654 = vmatmul.mubr.f32.gmra.mxu0 %v325
        %v655 = vpop.f32.mrf.mxu0
        %v656 = vadd.f32 0.0, %v655
        %v657 = vpop.f32.mrf.mxu0
        %658 = vmatprep.mubr.f32.mxu0 0.0
        %659 = vmatmul.mubr.f32.gmra.mxu0 %v326
        %v660 = vpop.f32.mrf.mxu0
        %v661 = vadd.f32 0.0, %v660
        %v662 = vpop.f32.mrf.mxu0
        %663 = vmatprep.mubr.f32.mxu0 0.0
        %664 = vmatmul.mubr.f32.gmra.mxu0 %v327
        %v665 = vpop.f32.mrf.mxu0
        %v666 = vadd.f32 0.0, %v665
        %v667 = vpop.f32.mrf.mxu0
        %668 = vmatprep.mubr.f32.mxu0 0.0
        %669 = vmatmul.mubr.f32.gmra.mxu0 %v328
        %v670 = vpop.f32.mrf.mxu0
        %v671 = vadd.f32 0.0, %v670
        %v672 = vpop.f32.mrf.mxu0
        %673 = vmatprep.mubr.f32.mxu0 0.0
        %674 = vmatmul.mubr.f32.gmra.mxu0 %v329
        %v675 = vpop.f32.mrf.mxu0
        %v676 = vadd.f32 0.0, %v675
        %v677 = vpop.f32.mrf.mxu0
        %678 = vmatprep.mubr.f32.mxu0 0.0
        %679 = vmatmul.mubr.f32.gmra.mxu0 %v330
        %v680 = vpop.f32.mrf.mxu0
        %v681 = vadd.f32 0.0, %v680
        %v682 = vpop.f32.mrf.mxu0
        %683 = vmatprep.mubr.f32.mxu0 0.0
        %684 = vmatmul.mubr.f32.gmra.mxu0 %v331
        %v685 = vpop.f32.mrf.mxu0
        %v686 = vadd.f32 0.0, %v685
        %v687 = vpop.f32.mrf.mxu0
        %688 = vmatprep.mubr.f32.mxu0 0.0
        %689 = vmatmul.mubr.f32.gmra.mxu0 %v332
        %v690 = vpop.f32.mrf.mxu0
        %v691 = vadd.f32 0.0, %v690
        %v692 = vpop.f32.mrf.mxu0
        %693 = vmatprep.mubr.f32.mxu0 0.0
        %694 = vmatmul.mubr.f32.gmra.mxu0 %v333
        %v695 = vpop.f32.mrf.mxu0
        %v696 = vadd.f32 0.0, %v695
        %v697 = vpop.f32.mrf.mxu0
        %698 = vmatprep.mubr.f32.mxu0 0.0
        %699 = vmatmul.mubr.f32.gmra.mxu0 %v334
        %v700 = vpop.f32.mrf.mxu0
        %v701 = vadd.f32 0.0, %v700
        %v702 = vpop.f32.mrf.mxu0
        %703 = vdwg.mxu0
        %v704 = vmul.f32 %v383, 15.0
        %v705 = vmul.f32 %v384, 15.0
        %v706 = vmul.f32 %v385, 15.0
        %v707 = vmul.f32 %v386, 15.0
        %v708 = vmul.f32 %v387, 15.0
        %v709 = vmul.f32 %v388, 15.0
        %v710 = vmul.f32 %v389, 15.0
        %v711 = vmul.f32 %v390, 15.0
        %v712 = vmul.f32 %v391, 15.0
        %v713 = vmul.f32 %v392, 15.0
        %v714 = vmul.f32 %v393, 15.0
        %v715 = vmul.f32 %v394, 15.0
        %v716 = vmul.f32 %v395, 15.0
        %v717 = vmul.f32 %v396, 15.0
        %v718 = vmul.f32 %v397, 15.0
        %v719 = vmul.f32 %v398, 15.0
        %v720 = vmul.f32 %v626, %v704
        %v721 = vmul.f32 %v631, %v705
        %v722 = vmul.f32 %v636, %v706
        %v723 = vmul.f32 %v641, %v707
        %v724 = vmul.f32 %v646, %v708
        %v725 = vmul.f32 %v651, %v709
        %v726 = vmul.f32 %v656, %v710
        %v727 = vmul.f32 %v661, %v711
        %v728 = vmul.f32 %v666, %v712
        %v729 = vmul.f32 %v671, %v713
        %v730 = vmul.f32 %v676, %v714
        %v731 = vmul.f32 %v681, %v715
        %v732 = vmul.f32 %v686, %v716
        %v733 = vmul.f32 %v691, %v717
        %v734 = vmul.f32 %v696, %v718
        %v735 = vmul.f32 %v701, %v719
        %v752 = vlaneseq
        %v753 = vshrl.u32 %v752, 7
        %v754 = vsub.s32 %v301, %v753
        %v755 = vrot.slane %v543, %v754
        %v756 = vadd.s32 %v301, 4294967288
        %v757 = vlaneseq
        %v758 = vshrl.u32 %v757, 7
        %v759 = vsub.s32 %v756, %v758
        %v760 = vrot.slane %v544, %v759
        %vm761 = vcmask 130112
        %v762 = vsel %vm761, %v760, %v755
        %v763 = vadd.s32 %v301, 4294967280
        %v764 = vlaneseq
        %v765 = vshrl.u32 %v764, 7
        %v766 = vsub.s32 %v763, %v765
        %v767 = vrot.slane %v545, %v766
        %vm768 = vcmask 195712
        %v769 = vsel %vm768, %v767, %v762
        %v770 = vadd.s32 %v301, 4294967272
        %v771 = vlaneseq
        %v772 = vshrl.u32 %v771, 7
        %v773 = vsub.s32 %v770, %v772
        %v774 = vrot.slane %v546, %v773
        %vm775 = vcmask 261312
        %v776 = vsel %vm775, %v774, %v769
        %v777 = vadd.s32 %v301, 4294967264
        %v778 = vlaneseq
        %v779 = vshrl.u32 %v778, 7
        %v780 = vsub.s32 %v777, %v779
        %v781 = vrot.slane %v547, %v780
        %vm782 = vcmask 326912
        %v783 = vsel %vm782, %v781, %v776
        %v784 = vadd.s32 %v301, 4294967256
        %v785 = vlaneseq
        %v786 = vshrl.u32 %v785, 7
        %v787 = vsub.s32 %v784, %v786
        %v788 = vrot.slane %v548, %v787
        %vm789 = vcmask 392512
        %v790 = vsel %vm789, %v788, %v783
        %v791 = vadd.s32 %v301, 4294967248
        %v792 = vlaneseq
        %v793 = vshrl.u32 %v792, 7
        %v794 = vsub.s32 %v791, %v793
        %v795 = vrot.slane %v549, %v794
        %vm796 = vcmask 458112
        %v797 = vsel %vm796, %v795, %v790
        %v798 = vadd.s32 %v301, 4294967240
        %v799 = vlaneseq
        %v800 = vshrl.u32 %v799, 7
        %v801 = vsub.s32 %v798, %v800
        %v802 = vrot.slane %v550, %v801
        %vm803 = vcmask 523712
        %v804 = vsel %vm803, %v802, %v797
        %v805 = vadd.s32 %v301, 4294967232
        %v806 = vlaneseq
        %v807 = vshrl.u32 %v806, 7
        %v808 = vsub.s32 %v805, %v807
        %v809 = vrot.slane %v551, %v808
        %vm810 = vcmask 589312
        %v811 = vsel %vm810, %v809, %v804
        %v812 = vadd.s32 %v301, 4294967224
        %v813 = vlaneseq
        %v814 = vshrl.u32 %v813, 7
        %v815 = vsub.s32 %v812, %v814
        %v816 = vrot.slane %v552, %v815
        %vm817 = vcmask 654912
        %v818 = vsel %vm817, %v816, %v811
        %v819 = vadd.s32 %v301, 4294967216
        %v820 = vlaneseq
        %v821 = vshrl.u32 %v820, 7
        %v822 = vsub.s32 %v819, %v821
        %v823 = vrot.slane %v553, %v822
        %vm824 = vcmask 720512
        %v825 = vsel %vm824, %v823, %v818
        %v826 = vadd.s32 %v301, 4294967208
        %v827 = vlaneseq
        %v828 = vshrl.u32 %v827, 7
        %v829 = vsub.s32 %v826, %v828
        %v830 = vrot.slane %v554, %v829
        %vm831 = vcmask 786112
        %v832 = vsel %vm831, %v830, %v825
        %v833 = vadd.s32 %v301, 4294967200
        %v834 = vlaneseq
        %v835 = vshrl.u32 %v834, 7
        %v836 = vsub.s32 %v833, %v835
        %v837 = vrot.slane %v555, %v836
        %vm838 = vcmask 851712
        %v839 = vsel %vm838, %v837, %v832
        %v840 = vadd.s32 %v301, 4294967192
        %v841 = vlaneseq
        %v842 = vshrl.u32 %v841, 7
        %v843 = vsub.s32 %v840, %v842
        %v844 = vrot.slane %v556, %v843
        %vm845 = vcmask 917312
        %v846 = vsel %vm845, %v844, %v839
        %v847 = vadd.s32 %v301, 4294967184
        %v848 = vlaneseq
        %v849 = vshrl.u32 %v848, 7
        %v850 = vsub.s32 %v847, %v849
        %v851 = vrot.slane %v557, %v850
        %vm852 = vcmask 982912
        %v853 = vsel %vm852, %v851, %v846
        %v854 = vadd.s32 %v301, 4294967176
        %v855 = vlaneseq
        %v856 = vshrl.u32 %v855, 7
        %v857 = vsub.s32 %v854, %v856
        %v858 = vrot.slane %v558, %v857
        %vm859 = vcmask 1048512
        %v860 = vsel %vm859, %v858, %v853
        %vm861 = vcmask 1042434
        %v862 = vsel %vm861, %v860, %v860
        %vm863 = vcmask 1043459
        %v864 = vsel %vm863, %v860, %v862
        %vm865 = vcmask 1044484
        %v866 = vsel %vm865, %v860, %v864
        %vm867 = vcmask 1045509
        %v868 = vsel %vm867, %v860, %v866
        %vm869 = vcmask 1046534
        %v870 = vsel %vm869, %v860, %v868
        %vm871 = vcmask 1047559
        %v872 = vsel %vm871, %v860, %v870
        %v874 = vmul.f32 %v720, %v872
        %v875 = vmul.f32 %v721, %v872
        %v876 = vmul.f32 %v722, %v872
        %v877 = vmul.f32 %v723, %v872
        %v878 = vmul.f32 %v724, %v872
        %v879 = vmul.f32 %v725, %v872
        %v880 = vmul.f32 %v726, %v872
        %v881 = vmul.f32 %v727, %v872
        %v882 = vmul.f32 %v728, %v872
        %v883 = vmul.f32 %v729, %v872
        %v884 = vmul.f32 %v730, %v872
        %v885 = vmul.f32 %v731, %v872
        %v886 = vmul.f32 %v732, %v872
        %v887 = vmul.f32 %v733, %v872
        %v888 = vmul.f32 %v734, %v872
        %v889 = vmul.f32 %v735, %v872
        %v890 = vxor.u32 %v874, 2147483648
        %v891 = vxor.u32 %v875, 2147483648
        %v892 = vxor.u32 %v876, 2147483648
        %v893 = vxor.u32 %v877, 2147483648
        %v894 = vxor.u32 %v878, 2147483648
        %v895 = vxor.u32 %v879, 2147483648
        %v896 = vxor.u32 %v880, 2147483648
        %v897 = vxor.u32 %v881, 2147483648
        %v898 = vxor.u32 %v882, 2147483648
        %v899 = vxor.u32 %v883, 2147483648
        %v900 = vxor.u32 %v884, 2147483648
        %v901 = vxor.u32 %v885, 2147483648
        %v902 = vxor.u32 %v886, 2147483648
        %v903 = vxor.u32 %v887, 2147483648
        %v904 = vxor.u32 %v888, 2147483648
        %v905 = vxor.u32 %v889, 2147483648
        %v906 = vmul.f32 %v890, 1.442695
        %v907 = vpow.pop %v906
        %v908 = vmul.f32 %v891, 1.442695
        %v909 = vpow.pop %v908
        %v910 = vmul.f32 %v892, 1.442695
        %v911 = vpow.pop %v910
        %v912 = vmul.f32 %v893, 1.442695
        %v913 = vpow.pop %v912
        %v914 = vmul.f32 %v894, 1.442695
        %v915 = vpow.pop %v914
        %v916 = vmul.f32 %v895, 1.442695
        %v917 = vpow.pop %v916
        %v918 = vmul.f32 %v896, 1.442695
        %v919 = vpow.pop %v918
        %v920 = vmul.f32 %v897, 1.442695
        %v921 = vpow.pop %v920
        %v922 = vmul.f32 %v898, 1.442695
        %v923 = vpow.pop %v922
        %v924 = vmul.f32 %v899, 1.442695
        %v925 = vpow.pop %v924
        %v926 = vmul.f32 %v900, 1.442695
        %v927 = vpow.pop %v926
        %v928 = vmul.f32 %v901, 1.442695
        %v929 = vpow.pop %v928
        %v930 = vmul.f32 %v902, 1.442695
        %v931 = vpow.pop %v930
        %v932 = vmul.f32 %v903, 1.442695
        %v933 = vpow.pop %v932
        %v934 = vmul.f32 %v904, 1.442695
        %v935 = vpow.pop %v934
        %v936 = vmul.f32 %v905, 1.442695
        %v937 = vpow.pop %v936
        %v938 = vadd.f32 %v907, 1.0
        %v939 = vadd.f32 %v909, 1.0
        %v940 = vadd.f32 %v911, 1.0
        %v941 = vadd.f32 %v913, 1.0
        %v942 = vadd.f32 %v915, 1.0
        %v943 = vadd.f32 %v917, 1.0
        %v944 = vadd.f32 %v919, 1.0
        %v945 = vadd.f32 %v921, 1.0
        %v946 = vadd.f32 %v923, 1.0
        %v947 = vadd.f32 %v925, 1.0
        %v948 = vadd.f32 %v927, 1.0
        %v949 = vadd.f32 %v929, 1.0
        %v950 = vadd.f32 %v931, 1.0
        %v951 = vadd.f32 %v933, 1.0
        %v952 = vadd.f32 %v935, 1.0
        %v953 = vadd.f32 %v937, 1.0
        %v954 = vrcp.pop %v938
        %v955 = vmul.f32 1.0, %v954
        %v956 = vrcp.pop %v939
        %v957 = vmul.f32 1.0, %v956
        %v958 = vrcp.pop %v940
        %v959 = vmul.f32 1.0, %v958
        %v960 = vrcp.pop %v941
        %v961 = vmul.f32 1.0, %v960
        %v962 = vrcp.pop %v942
        %v963 = vmul.f32 1.0, %v962
        %v964 = vrcp.pop %v943
        %v965 = vmul.f32 1.0, %v964
        %v966 = vrcp.pop %v944
        %v967 = vmul.f32 1.0, %v966
        %v968 = vrcp.pop %v945
        %v969 = vmul.f32 1.0, %v968
        %v970 = vrcp.pop %v946
        %v971 = vmul.f32 1.0, %v970
        %v972 = vrcp.pop %v947
        %v973 = vmul.f32 1.0, %v972
        %v974 = vrcp.pop %v948
        %v975 = vmul.f32 1.0, %v974
        %v976 = vrcp.pop %v949
        %v977 = vmul.f32 1.0, %v976
        %v978 = vrcp.pop %v950
        %v979 = vmul.f32 1.0, %v978
        %v980 = vrcp.pop %v951
        %v981 = vmul.f32 1.0, %v980
        %v982 = vrcp.pop %v952
        %v983 = vmul.f32 1.0, %v982
        %v984 = vrcp.pop %v953
        %v985 = vmul.f32 1.0, %v984
        %986 = vst [vmem:[%s232] sm:$0xff] %v955
        %987 = vst [vmem:[%s232 + $0x8] sm:$0xff] %v957
        %988 = vst [vmem:[%s232 + $0x10] sm:$0xff] %v959
        %989 = vst [vmem:[%s232 + $0x18] sm:$0xff] %v961
        %990 = vst [vmem:[%s232 + $0x20] sm:$0xff] %v963
        %991 = vst [vmem:[%s232 + $0x28] sm:$0xff] %v965
        %992 = vst [vmem:[%s232 + $0x30] sm:$0xff] %v967
        %993 = vst [vmem:[%s232 + $0x38] sm:$0xff] %v969
        %994 = vst [vmem:[%s232 + $0x40] sm:$0xff] %v971
        %995 = vst [vmem:[%s232 + $0x48] sm:$0xff] %v973
        %996 = vst [vmem:[%s232 + $0x50] sm:$0xff] %v975
        %997 = vst [vmem:[%s232 + $0x58] sm:$0xff] %v977
        %998 = vst [vmem:[%s232 + $0x60] sm:$0xff] %v979
        %999 = vst [vmem:[%s232 + $0x68] sm:$0xff] %v981
        %1000 = vst [vmem:[%s232 + $0x70] sm:$0xff] %v983
        %1001 = vst [vmem:[%s232 + $0x78] sm:$0xff] %v985
        %s1002 = sand.u32 %s109, 1
        %s1003 = scalar_lea.sflag [#allocation4], %s1002
        %s1004 = sand.u32 %s109, 1
        %s1005 = smul.addr %s1004, 128
        %s1006 = scalar_lea.vmem [#allocation7], %s1005
        // Predicated region
        $region37: #{tpu_custom_call.1} parent=27 // pred_check
          %p1007 = pneg %p119
        $region38: #{tpu_custom_call.1} parent=27 // pred_check_branch
          %1009 = sbr.rel (%p1007) target = $region40
        $region39: #{tpu_custom_call.1} parent=27 // pred_region
          %s1010 = smul.u32 16, %s28
          %s1012 = ssub.s32 2048, 2048
          %1013 = vsyncadd %s1003, %s1012
          %s1014 = sadd.s32 %s29, %s1010
          %s1015 = smul.addr %s27, 16
          %s1016 = sadd.s32 %s1014, %s1015
          %s1017 = smul.addr %s1016, 128
          %s1018 = scalar_lea.hbm %s2, %s1017
          %s1019 = sshll.u32 %s1006, 4
          %s1020 = int_to_ptr.vmem [resolvable:$true] %s1019
          %1025 = dma.vmem_to_hbm [thread:$0]  %s1020, 2048, %s1018, %s1003, 128, 128, 8
        $region40: #{tpu_custom_call.1} parent=27 // pred_fallthru
          _
      $region28: #{tpu_custom_call.1} parent=5 // pred_fallthru
        _
      %p1026 = scmp.le.s32.totalorder 2, %s17
      // Predicated region
      $region41: #{tpu_custom_call.1} parent=5 // pred_check
        %p1027 = pneg %p1026
      $region42: #{tpu_custom_call.1} parent=5 // pred_check_branch
        %1029 = sbr.rel (%p1027) target = $region44
      $region43: #{tpu_custom_call.1} parent=5 // pred_region
        %s1030 = ssub.s32 %s17, 2
        // Predicated region
        $region45: #{tpu_custom_call.1} parent=43 // pred_check
          %p1031 = pneg %p125
        $region46: #{tpu_custom_call.1} parent=43 // pred_check_branch
          %1033 = sbr.rel (%p1031) target = $region48
        $region47: #{tpu_custom_call.1} parent=43 // pred_region
          %s1034 = sand.u32 %s110, 1
          %s1035 = scalar_lea.sflag [#allocation4], %s1034
          %s1036 = sand.u32 %s110, 1
          %s1037 = smul.addr %s1036, 128
          %s1038 = scalar_lea.vmem [#allocation7], %s1037
          %1039 = dma.done %s1035, 2048
        $region48: #{tpu_custom_call.1} parent=43 // pred_fallthru
          _
      $region44: #{tpu_custom_call.1} parent=5 // pred_fallthru
        _
    $region6: #{tpu_custom_call.1} parent=1 // loop_footer
      %s21 = sadd.s32 1, %s17
    $region7: #{tpu_custom_call.1} parent=1 // loop_footer_branch
      %16 = sbr.rel target = $region3
    $region8: #{tpu_custom_call.1} parent=1 // loop_exit
      _
    %1040 = vsyncpa [#allocation3], 1
    %s1041 = scalar_lea.sflag [#allocation3], 1
    %1042 = vsyncpa %s1041, 1
    %1043 = vsyncpa [#allocation6], 1
    %s1044 = scalar_lea.sflag [#allocation6], 1
    %1045 = vsyncpa %s1044, 1
    %1046 = vsyncpa [#allocation4], 1
    %s1047 = scalar_lea.sflag [#allocation4], 1
    %1048 = vsyncpa %s1047, 1

</llo_original>
